<compile_context>
chip_gen: v5e
topology: v5e:2x2
jax: 0.10.0
libtpu: 0.0.40
codegen_flags: <defaults>
</compile_context>

<pallas_src>
import jax
import jax.numpy as jnp
from jax.experimental import pallas as pl
from jax.experimental.pallas import tpu as pltpu


def _proj_kernel(h_ref,        # VMEM (TM, E)   bf16  flattened hidden rows
                 w_ref,        # VMEM (E, TV)   bf16  vocab-projection weight tile
                 b_ref,        # VMEM (1, TV)   f32   bias tile
                 valid_ref,    # VMEM (TM, 1)   f32   {0,1} length-mask per row
                 out_ref):     # VMEM (TM, TV)  out_dtype
    # (TM, E) @ (E, TV) -> (TM, TV); bf16 inputs, f32 accumulation on the MXU.
    acc = jnp.dot(h_ref[...], w_ref[...], preferred_element_type=jnp.float32)
    # Bias broadcasts over rows; the length mask broadcasts over lanes and zeroes
    # out positions >= lens[b] (bias included), matching where(pos < lens, ., 0).
    out_ref[...] = ((acc + b_ref[...]) * valid_ref[...]).astype(out_ref.dtype)


def _round_up(x, m):
    return ((x + m - 1) // m) * m


def _vmem_capacity_bytes():
    # 128 MiB on v5e/v6e, 64 MiB per TC on v7x; conservative fallback = 64 MiB.
    try:
        cap = getattr(pltpu.get_tpu_info(), "vmem_capacity_bytes", None)
        if cap:
            return int(cap)
    except Exception:
        pass
    return 64 << 20


def _pick_tiles(m, e, v, out_bytes, budget_bytes):
    """Pick (TM, TV): lane-dense tiles whose double-buffered working set fits budget."""
    tm = min(512 if budget_bytes >= (24 << 20) else 256, _round_up(m, 16))

    def footprint(tm_, tv_):
        return (2 * tm_ * e * 2           # h double buffer (bf16)
                + 2 * tm_ * 128 * 4       # (TM,1) validity mask, lane-padded to 128
                + 2 * e * tv_ * 2         # weight double buffer (bf16)
                + 2 * 8 * tv_ * 4         # bias, sublane-padded to 8
                + 2 * tm_ * tv_ * out_bytes)  # output double buffer

    while True:
        tv = None
        for cand in (4096, 2048, 1024, 512, 256, 128):
            if v % cand == 0 and footprint(tm, cand) <= budget_bytes:
                tv = cand
                break
        if tv is None:
            tv = 128 if v % 128 == 0 else v   # last resort (tiny / odd vocab)
        if footprint(tm, tv) <= budget_bytes or tm <= 128:
            return tm, tv
        tm = max(128, tm // 2)                # shrink M tile before losing lane width


def decoder_forward(z, x, lens, params, *, compute_dtype=jnp.bfloat16,
                    out_dtype=jnp.float32):
    """z: (B, L) f32, x: (B, S) int32, lens: (B,) int32 -> logits (B, S, V)."""
    emb_table = params["embedding"]            # (V, E)
    w_z = params["w_z"]                        # (L, E)
    w_out = params["w_out"]                    # (E, V)
    b_out = params["b_out"]                    # (V,)

    B, S = x.shape
    V, E = emb_table.shape

    # ---- plain-JAX glue (tiny relative to the vocab projection) ----
    emb_x = jnp.take(emb_table, x, axis=0)                       # (B, S, E) f32
    h = emb_x + jnp.dot(z, w_z)[:, None, :]                      # latent conditioning
    h_flat = h.reshape(B * S, E).astype(compute_dtype)           # B*S -> MXU M dim

    # Per-row {0,1} validity multiplier from lens (pos < lens[b]).
    pos = jnp.arange(S, dtype=jnp.int32)[None, :]
    valid = (pos < lens[:, None]).astype(jnp.float32).reshape(B * S, 1)

    # ---- generation-aware tile sizes + VMEM budget ----
    M = B * S
    phys_vmem = _vmem_capacity_bytes()
    budget = min(phys_vmem // 2, 32 << 20)              # double-buffered working set
    vmem_limit = min(phys_vmem - (8 << 20), 100 << 20)  # explicit scoped VMEM limit

    out_bytes = jnp.dtype(out_dtype).itemsize
    TM, TV = _pick_tiles(M, E, V, out_bytes, budget)

    M_pad = _round_up(M, TM)
    if M_pad != M:
        h_flat = jnp.pad(h_flat, ((0, M_pad - M), (0, 0)))
        valid = jnp.pad(valid, ((0, M_pad - M), (0, 0)))

    w_c = w_out.astype(compute_dtype)          # (E, V) bf16
    b2d = b_out.reshape(1, V).astype(jnp.float32)

    # Grid: vocab tiles OUTER, M tiles INNER.  The weight/bias block indices are
    # constant across the inner M loop (Pallas keeps them VMEM-resident); only the
    # small h/mask/output tiles stream per step.  The leading "parallel" vocab axis
    # is what megacore shards across v7x's two TensorCores -> disjoint W_out halves.
    grid = (V // TV, M_pad // TM)

    out = pl.pallas_call(
        _proj_kernel,
        out_shape=jax.ShapeDtypeStruct((M_pad, V), out_dtype),
        grid_spec=pltpu.PrefetchScalarGridSpec(
            num_scalar_prefetch=0,
            grid=grid,
            in_specs=[
                pl.BlockSpec((TM, E), lambda v, m: (m, 0)),   # h rows (streamed)
                pl.BlockSpec((E, TV), lambda v, m: (0, v)),   # weight tile (resident)
                pl.BlockSpec((1, TV), lambda v, m: (0, v)),   # bias tile (resident)
                pl.BlockSpec((TM, 1), lambda v, m: (m, 0)),   # length-mask rows
            ],
            out_specs=pl.BlockSpec((TM, TV), lambda v, m: (m, v)),
        ),
        compiler_params=pltpu.CompilerParams(
            dimension_semantics=("parallel", "parallel"),
            vmem_limit_bytes=vmem_limit),
    )(h_flat, w_c, b2d, valid)

    return out[:M].reshape(B, S, V)


def init_params(key, latent_dim, vocab_dim, embedding_dim):
    k1, k2, k3, k4 = jax.random.split(key, 4)
    return {
        "embedding": jax.random.normal(k1, (vocab_dim, embedding_dim), jnp.float32) * 0.02,
        "w_z":       jax.random.normal(k2, (latent_dim, embedding_dim), jnp.float32) * 0.02,
        "w_out":     jax.random.normal(k3, (embedding_dim, vocab_dim), jnp.float32) * 0.02,
        "b_out":     jax.random.normal(k4, (vocab_dim,), jnp.float32) * 0.02,
    }


if __name__ == "__main__":
    # Config mirroring the Decoder.__init__ args (small synthetic, lane-dense E/V).
    args = dict(latent_dim=32, vocab_dim=512, max_sequence_length=8,
                sos_index=1, eos_index=2, pad_index=0, unk_index=3)
    B = 2
    S = args["max_sequence_length"]
    E = 128  # embedding_dim

    key = jax.random.PRNGKey(0)
    kp, kz, kx, kl = jax.random.split(key, 4)

    params = init_params(kp, args["latent_dim"], args["vocab_dim"], E)

    z = jax.random.normal(kz, (B, args["latent_dim"]), jnp.float32)
    x = jax.random.randint(kx, (B, S), 0, args["vocab_dim"], dtype=jnp.int32)
    lens = jnp.array([S, S - 3], dtype=jnp.int32)

    logits = decoder_forward(z, x, lens, params)
    jax.block_until_ready(logits)
    assert logits.shape == (B, S, args["vocab_dim"])

    # ---- correctness checks ----
    emb_x = jnp.take(params["embedding"], x, axis=0)
    h = emb_x + (z @ params["w_z"])[:, None, :]
    pos3 = jnp.arange(S)[None, :, None]
    keep = pos3 < lens[:, None, None]

    # (a) tight check against a reference using the same bf16 matmul math
    ref_bf16 = jnp.dot(h.reshape(B * S, E).astype(jnp.bfloat16),
                       params["w_out"].astype(jnp.bfloat16),
                       preferred_element_type=jnp.float32).reshape(B, S, -1)
    ref_bf16 = jnp.where(keep, ref_bf16 + params["b_out"], 0.0)
    assert jnp.allclose(logits, ref_bf16, atol=1e-4, rtol=1e-4)

    # (b) loose check against the pure-f32 reference (bf16 inputs shift numerics)
    ref_f32 = jnp.where(keep, h @ params["w_out"] + params["b_out"], 0.0)
    assert jnp.allclose(logits, ref_f32, atol=5e-3, rtol=5e-2)

    print("KERNEL_OK")
</pallas_src>

<mosaic_0001>
module attributes {stable_mosaic.version = 11 : i64} {
  func.func @_proj_kernel(%arg0: i32, %arg1: i32, %arg2: memref<16x128xbf16, #tpu.memory_space<vmem>>, %arg3: memref<128x512xbf16, #tpu.memory_space<vmem>>, %arg4: memref<1x512xf32, #tpu.memory_space<vmem>>, %arg5: memref<16x1xf32, #tpu.memory_space<vmem>>, %arg6: memref<16x512xf32, #tpu.memory_space<vmem>>) attributes {dimension_semantics = [#tpu.dimension_semantics<parallel>, #tpu.dimension_semantics<parallel>], iteration_bounds = array<i64: 1, 1>, scalar_prefetch = 0 : i64, scratch_operands = 0 : i64, tpu.core_type = #tpu.core_type<tc>, window_params = [{transform_indices = @transform_0, window_bounds = array<i64: 16, 128>}, {transform_indices = @transform_1, window_bounds = array<i64: 128, 512>}, {transform_indices = @transform_2, window_bounds = array<i64: 1, 512>}, {transform_indices = @transform_3, window_bounds = array<i64: 16, 1>}, {transform_indices = @transform_4, window_bounds = array<i64: 16, 512>}]} {
    %c0 = arith.constant 0 : index
    %c0_0 = arith.constant 0 : index
    %0 = vector.load %arg2[%c0, %c0_0] : memref<16x128xbf16, #tpu.memory_space<vmem>>, vector<16x128xbf16>
    %c0_1 = arith.constant 0 : index
    %c0_2 = arith.constant 0 : index
    %1 = vector.load %arg3[%c0_1, %c0_2] : memref<128x512xbf16, #tpu.memory_space<vmem>>, vector<128x512xbf16>
    %cst = arith.constant dense<0.000000e+00> : vector<16x512xf32>
    %2 = tpu.matmul %0, %1, %cst {dimension_numbers = #tpu.dot_dimension_numbers<[1], [0], [0], [1], [0, 0, 1, 1], [], []>} : vector<16x128xbf16>, vector<128x512xbf16>, vector<16x512xf32> -> vector<16x512xf32>
    %c0_3 = arith.constant 0 : index
    %c0_4 = arith.constant 0 : index
    %3 = vector.load %arg4[%c0_3, %c0_4] : memref<1x512xf32, #tpu.memory_space<vmem>>, vector<1x512xf32>
    %4 = vector.broadcast %3 : vector<1x512xf32> to vector<16x512xf32>
    %5 = arith.addf %2, %4 : vector<16x512xf32>
    %c0_5 = arith.constant 0 : index
    %c0_6 = arith.constant 0 : index
    %6 = vector.load %arg5[%c0_5, %c0_6] : memref<16x1xf32, #tpu.memory_space<vmem>>, vector<16x1xf32>
    %7 = vector.broadcast %6 : vector<16x1xf32> to vector<16x512xf32>
    %8 = arith.mulf %5, %7 : vector<16x512xf32>
    %c0_7 = arith.constant 0 : index
    %c0_8 = arith.constant 0 : index
    %9 = vector.load %arg6[%c0_7, %c0_8] : memref<16x512xf32, #tpu.memory_space<vmem>>, vector<16x512xf32>
    tpu.vector_store %arg6[%c0_7, %c0_8], %8 {strides = array<i32>} : memref<16x512xf32, #tpu.memory_space<vmem>>, vector<16x512xf32>,
    return
  }
  func.func @transform_0(%arg0: i32, %arg1: i32) -> (i32, i32) {
    %c0_i32 = arith.constant 0 : i32
    %c0_i32_0 = arith.constant 0 : i32
    return %arg1, %c0_i32 : i32, i32
  }
  func.func @transform_1(%arg0: i32, %arg1: i32) -> (i32, i32) {
    %c0_i32 = arith.constant 0 : i32
    %c0_i32_0 = arith.constant 0 : i32
    return %c0_i32, %arg0 : i32, i32
  }
  func.func @transform_2(%arg0: i32, %arg1: i32) -> (i32, i32) {
    %c0_i32 = arith.constant 0 : i32
    %c0_i32_0 = arith.constant 0 : i32
    return %c0_i32, %arg0 : i32, i32
  }
  func.func @transform_3(%arg0: i32, %arg1: i32) -> (i32, i32) {
    %c0_i32 = arith.constant 0 : i32
    %c0_i32_0 = arith.constant 0 : i32
    return %arg1, %c0_i32 : i32, i32
  }
  func.func @transform_4(%arg0: i32, %arg1: i32) -> (i32, i32) {
    %c0_i32 = arith.constant 0 : i32
    return %arg1, %arg0 : i32, i32
  }
}

</mosaic_0001>

<llo_original>
// kernel: tpu_custom_call.1
$region0: #{tpu_custom_call.1}
  #allocation0 [shape = 'u32[]', space=smem, size = 0x4, offset = 0x4, fixed_abs, tag = 'smem constant byte address 0x4 - core index']
  #allocation1 [shape = 'u32[72,128]{1,0:T(1,128)}', space=vmem, size = 0x9000, scoped, tag = 'internal scratch']
  %s0 = inlined_call_operand.vmem [shape: bf16[16,128], index: 0, kind: input, shape index: {}]
  %s1 = inlined_call_operand.hbm [shape: bf16[128,512], index: 1, kind: input, shape index: {}]
  %s2 = inlined_call_operand.vmem [shape: f32[1,512], index: 2, kind: input, shape index: {}]
  %s3 = inlined_call_operand.vmem [shape: f32[16,1], index: 3, kind: input, shape index: {}]
  %s4 = inlined_call_operand.hbm [shape: f32[16,512], index: 4, kind: output, shape index: {}]
  %s5 = sld [smem:[#allocation0]]
  $region30: #{tpu_custom_call.1} parent=0
    _
  %s7 = ssub.s32 1, %s5
  %s8 = scalar_select 0, %s7, %s5
  $region1: #{tpu_custom_call.1} parent=0
    #allocation2 [shape = 'u8[131072]{0}', space=vmem, size = 0x20000, scoped, tag = 'input window, operand 1, single buffered']
    #allocation3 [shape = 's32[1]{0}', space=sflag, size = 0x4, scoped, tag = 'scoped memory for tpu_custom_call.1']
    #allocation4 [shape = 's32[1]{0}', space=sflag, size = 0x4, scoped, tag = 'scoped memory for tpu_custom_call.1']
    #allocation5 [shape = 'u8[32768]{0}', space=vmem, size = 0x8000, scoped, tag = 'output window, operand 0, single buffered']
    %9 = vsyncpa [#allocation3], 0
    %10 = vsyncpa [#allocation4], 0
    // Predicated region
    $region2: #{tpu_custom_call.1} parent=1 // pred_check
      _
    $region3: #{tpu_custom_call.1} parent=1 // pred_check_branch
      %12 = sbr.rel (0) target = $region5
    $region4: #{tpu_custom_call.1} parent=1 // pred_region
      _
    $region5: #{tpu_custom_call.1} parent=1 // pred_fallthru
      _
    // Predicated region
    $region6: #{tpu_custom_call.1} parent=1 // pred_check
      _
    $region7: #{tpu_custom_call.1} parent=1 // pred_check_branch
      %14 = sbr.rel (0) target = $region9
    $region8: #{tpu_custom_call.1} parent=1 // pred_region
      %16 = vsyncadd [#allocation3], 0
      %s17 = sshll.u32 %s1, 4
      %s18 = int_to_ptr.hbm [resolvable:$true] %s17
      %s19 = sshll.u32 [#allocation2], 4
      %s20 = int_to_ptr.vmem [resolvable:$true] %s19
      %25 = dma.hbm_to_vmem [thread:$0]  %s18, 4096, %s20, [#allocation3], 256, 256, 16
    $region9: #{tpu_custom_call.1} parent=1 // pred_fallthru
      _
    // Predicated region
    $region10: #{tpu_custom_call.1} parent=1 // pred_check
      _
    $region11: #{tpu_custom_call.1} parent=1 // pred_check_branch
      %27 = sbr.rel (0) target = $region13
    $region12: #{tpu_custom_call.1} parent=1 // pred_region
      _
    $region13: #{tpu_custom_call.1} parent=1 // pred_fallthru
      _
    // Predicated region
    $region14: #{tpu_custom_call.1} parent=1 // pred_check
      _
    $region15: #{tpu_custom_call.1} parent=1 // pred_check_branch
      %29 = sbr.rel (0) target = $region17
    $region16: #{tpu_custom_call.1} parent=1 // pred_region
      _
    $region17: #{tpu_custom_call.1} parent=1 // pred_fallthru
      _
    // Predicated region
    $region18: #{tpu_custom_call.1} parent=1 // pred_check
      _
    $region19: #{tpu_custom_call.1} parent=1 // pred_check_branch
      %31 = sbr.rel (0) target = $region21
    $region20: #{tpu_custom_call.1} parent=1 // pred_region
      %33 = dma.done [#allocation3], 4096
    $region21: #{tpu_custom_call.1} parent=1 // pred_fallthru
      _
    %v34 = vld [vmem:[%s0] sm:$0xf]
    %v35 = vld [vmem:[%s0 + $0x4] sm:$0xf]
    %v36 = vld [vmem:[#allocation2] sm:$0xff]
    %v37 = vld [vmem:[#allocation2 + $0x8] sm:$0xff]
    %v38 = vld [vmem:[#allocation2 + $0x10] sm:$0xff]
    %v39 = vld [vmem:[#allocation2 + $0x18] sm:$0xff]
    %v40 = vld [vmem:[#allocation2 + $0x20] sm:$0xff]
    %v41 = vld [vmem:[#allocation2 + $0x28] sm:$0xff]
    %v42 = vld [vmem:[#allocation2 + $0x30] sm:$0xff]
    %v43 = vld [vmem:[#allocation2 + $0x38] sm:$0xff]
    %v44 = vld [vmem:[#allocation2 + $0x40] sm:$0xff]
    %v45 = vld [vmem:[#allocation2 + $0x48] sm:$0xff]
    %v46 = vld [vmem:[#allocation2 + $0x50] sm:$0xff]
    %v47 = vld [vmem:[#allocation2 + $0x58] sm:$0xff]
    %v48 = vld [vmem:[#allocation2 + $0x60] sm:$0xff]
    %v49 = vld [vmem:[#allocation2 + $0x68] sm:$0xff]
    %v50 = vld [vmem:[#allocation2 + $0x70] sm:$0xff]
    %v51 = vld [vmem:[#allocation2 + $0x78] sm:$0xff]
    %v52 = vld [vmem:[#allocation2 + $0x80] sm:$0xff]
    %v53 = vld [vmem:[#allocation2 + $0x88] sm:$0xff]
    %v54 = vld [vmem:[#allocation2 + $0x90] sm:$0xff]
    %v55 = vld [vmem:[#allocation2 + $0x98] sm:$0xff]
    %v56 = vld [vmem:[#allocation2 + $0xa0] sm:$0xff]
    %v57 = vld [vmem:[#allocation2 + $0xa8] sm:$0xff]
    %v58 = vld [vmem:[#allocation2 + $0xb0] sm:$0xff]
    %v59 = vld [vmem:[#allocation2 + $0xb8] sm:$0xff]
    %v60 = vld [vmem:[#allocation2 + $0xc0] sm:$0xff]
    %v61 = vld [vmem:[#allocation2 + $0xc8] sm:$0xff]
    %v62 = vld [vmem:[#allocation2 + $0xd0] sm:$0xff]
    %v63 = vld [vmem:[#allocation2 + $0xd8] sm:$0xff]
    %v64 = vld [vmem:[#allocation2 + $0xe0] sm:$0xff]
    %v65 = vld [vmem:[#allocation2 + $0xe8] sm:$0xff]
    %v66 = vld [vmem:[#allocation2 + $0xf0] sm:$0xff]
    %v67 = vld [vmem:[#allocation2 + $0xf8] sm:$0xff]
    %v68 = vld [vmem:[%s2] sm:$0xf]
    %v70 = vperm.slane %v68, 0
    %v71 = vperm.slane %v68, 1
    %v72 = vperm.slane %v68, 2
    %v73 = vperm.slane %v68, 3
    %v80 = vunpack.c.l.b16 %v34
    %v81 = vunpack.c.l.b16 %v35
    %v82 = vpack.c.b16 %v81, %v80
    %v116 = vunpack.c.l.b16 %v36
    %v117 = vunpack.c.h.b16 %v36
    %v118 = vunpack.c.l.b16 %v37
    %v119 = vunpack.c.h.b16 %v37
    %v120 = vunpack.c.l.b16 %v38
    %v121 = vunpack.c.h.b16 %v38
    %v122 = vunpack.c.l.b16 %v39
    %v123 = vunpack.c.h.b16 %v39
    %v124 = vunpack.c.l.b16 %v40
    %v125 = vunpack.c.h.b16 %v40
    %v126 = vunpack.c.l.b16 %v41
    %v127 = vunpack.c.h.b16 %v41
    %v128 = vunpack.c.l.b16 %v42
    %v129 = vunpack.c.h.b16 %v42
    %v130 = vunpack.c.l.b16 %v43
    %v131 = vunpack.c.h.b16 %v43
    %v132 = vunpack.c.l.b16 %v44
    %v133 = vunpack.c.h.b16 %v44
    %v134 = vunpack.c.l.b16 %v45
    %v135 = vunpack.c.h.b16 %v45
    %v136 = vunpack.c.l.b16 %v46
    %v137 = vunpack.c.h.b16 %v46
    %v138 = vunpack.c.l.b16 %v47
    %v139 = vunpack.c.h.b16 %v47
    %v140 = vunpack.c.l.b16 %v48
    %v141 = vunpack.c.h.b16 %v48
    %v142 = vunpack.c.l.b16 %v49
    %v143 = vunpack.c.h.b16 %v49
    %v144 = vunpack.c.l.b16 %v50
    %v145 = vunpack.c.h.b16 %v50
    %v146 = vunpack.c.l.b16 %v51
    %v147 = vunpack.c.h.b16 %v51
    %v148 = vunpack.c.l.b16 %v52
    %v149 = vunpack.c.h.b16 %v52
    %v150 = vunpack.c.l.b16 %v53
    %v151 = vunpack.c.h.b16 %v53
    %v152 = vunpack.c.l.b16 %v54
    %v153 = vunpack.c.h.b16 %v54
    %v154 = vunpack.c.l.b16 %v55
    %v155 = vunpack.c.h.b16 %v55
    %v156 = vunpack.c.l.b16 %v56
    %v157 = vunpack.c.h.b16 %v56
    %v158 = vunpack.c.l.b16 %v57
    %v159 = vunpack.c.h.b16 %v57
    %v160 = vunpack.c.l.b16 %v58
    %v161 = vunpack.c.h.b16 %v58
    %v162 = vunpack.c.l.b16 %v59
    %v163 = vunpack.c.h.b16 %v59
    %v164 = vunpack.c.l.b16 %v60
    %v165 = vunpack.c.h.b16 %v60
    %v166 = vunpack.c.l.b16 %v61
    %v167 = vunpack.c.h.b16 %v61
    %v168 = vunpack.c.l.b16 %v62
    %v169 = vunpack.c.h.b16 %v62
    %v170 = vunpack.c.l.b16 %v63
    %v171 = vunpack.c.h.b16 %v63
    %v172 = vunpack.c.l.b16 %v64
    %v173 = vunpack.c.h.b16 %v64
    %v174 = vunpack.c.l.b16 %v65
    %v175 = vunpack.c.h.b16 %v65
    %v176 = vunpack.c.l.b16 %v66
    %v177 = vunpack.c.h.b16 %v66
    %v178 = vunpack.c.l.b16 %v67
    %v179 = vunpack.c.h.b16 %v67
    %v180 = vpack.c.b16 %v120, %v116
    %v181 = vpack.c.b16 %v121, %v117
    %v182 = vpack.c.b16 %v122, %v118
    %v183 = vpack.c.b16 %v123, %v119
    %v184 = vpack.c.b16 %v128, %v124
    %v185 = vpack.c.b16 %v129, %v125
    %v186 = vpack.c.b16 %v130, %v126
    %v187 = vpack.c.b16 %v131, %v127
    %v188 = vpack.c.b16 %v136, %v132
    %v189 = vpack.c.b16 %v137, %v133
    %v190 = vpack.c.b16 %v138, %v134
    %v191 = vpack.c.b16 %v139, %v135
    %v192 = vpack.c.b16 %v144, %v140
    %v193 = vpack.c.b16 %v145, %v141
    %v194 = vpack.c.b16 %v146, %v142
    %v195 = vpack.c.b16 %v147, %v143
    %v196 = vpack.c.b16 %v152, %v148
    %v197 = vpack.c.b16 %v153, %v149
    %v198 = vpack.c.b16 %v154, %v150
    %v199 = vpack.c.b16 %v155, %v151
    %v200 = vpack.c.b16 %v160, %v156
    %v201 = vpack.c.b16 %v161, %v157
    %v202 = vpack.c.b16 %v162, %v158
    %v203 = vpack.c.b16 %v163, %v159
    %v204 = vpack.c.b16 %v168, %v164
    %v205 = vpack.c.b16 %v169, %v165
    %v206 = vpack.c.b16 %v170, %v166
    %v207 = vpack.c.b16 %v171, %v167
    %v208 = vpack.c.b16 %v176, %v172
    %v209 = vpack.c.b16 %v177, %v173
    %v210 = vpack.c.b16 %v178, %v174
    %v211 = vpack.c.b16 %v179, %v175
    %244 = vmatpush.bf16.msra.mxu0 %v208
    %245 = vmatpush.bf16.msra.mxu0 %v204
    %246 = vmatpush.bf16.msra.mxu0 %v200
    %247 = vmatpush.bf16.msra.mxu0 %v196
    %248 = vmatpush.bf16.msra.mxu0 %v192
    %249 = vmatpush.bf16.msra.mxu0 %v188
    %250 = vmatpush.bf16.msra.mxu0 %v184
    %251 = vmatpush.bf16.msra.mxu0 %v180
    %252 = vmatmul.bf16.gmra.mxu0 %v82
    %v253 = vpop.f32.mrf.mxu0
    %v254 = vadd.f32 %v70, %v253
    %v255 = vpop.f32.mrf.mxu0
    %v256 = vadd.f32 %v70, %v255
    %257 = vdwg.mxu0
    %258 = vmatpush.bf16.msra.mxu0 %v209
    %259 = vmatpush.bf16.msra.mxu0 %v205
    %260 = vmatpush.bf16.msra.mxu0 %v201
    %261 = vmatpush.bf16.msra.mxu0 %v197
    %262 = vmatpush.bf16.msra.mxu0 %v193
    %263 = vmatpush.bf16.msra.mxu0 %v189
    %264 = vmatpush.bf16.msra.mxu0 %v185
    %265 = vmatpush.bf16.msra.mxu0 %v181
    %266 = vmatmul.bf16.gmra.mxu0 %v82
    %v267 = vpop.f32.mrf.mxu0
    %v268 = vadd.f32 %v71, %v267
    %v269 = vpop.f32.mrf.mxu0
    %v270 = vadd.f32 %v71, %v269
    %271 = vdwg.mxu0
    %272 = vmatpush.bf16.msra.mxu0 %v210
    %273 = vmatpush.bf16.msra.mxu0 %v206
    %274 = vmatpush.bf16.msra.mxu0 %v202
    %275 = vmatpush.bf16.msra.mxu0 %v198
    %276 = vmatpush.bf16.msra.mxu0 %v194
    %277 = vmatpush.bf16.msra.mxu0 %v190
    %278 = vmatpush.bf16.msra.mxu0 %v186
    %279 = vmatpush.bf16.msra.mxu0 %v182
    %280 = vmatmul.bf16.gmra.mxu0 %v82
    %v281 = vpop.f32.mrf.mxu0
    %v282 = vadd.f32 %v72, %v281
    %v283 = vpop.f32.mrf.mxu0
    %v284 = vadd.f32 %v72, %v283
    %285 = vdwg.mxu0
    %286 = vmatpush.bf16.msra.mxu0 %v211
    %287 = vmatpush.bf16.msra.mxu0 %v207
    %288 = vmatpush.bf16.msra.mxu0 %v203
    %289 = vmatpush.bf16.msra.mxu0 %v199
    %290 = vmatpush.bf16.msra.mxu0 %v195
    %291 = vmatpush.bf16.msra.mxu0 %v191
    %292 = vmatpush.bf16.msra.mxu0 %v187
    %293 = vmatpush.bf16.msra.mxu0 %v183
    %294 = vmatmul.bf16.gmra.mxu0 %v82
    %v295 = vpop.f32.mrf.mxu0
    %v296 = vadd.f32 %v73, %v295
    %v297 = vpop.f32.mrf.mxu0
    %v298 = vadd.f32 %v73, %v297
    %299 = vdwg.mxu0
    %v300 = vld [vmem:[%s3] sm:$0xff]
    %v301 = vld [vmem:[%s3 + $0x8] sm:$0xff]
    %303 = vset.pattern.permute.xlu0 0
    %304 = vperm.xlu0 %303, %v300
    %v305 = vpop.permute.xlu0 %304
    %308 = vset.pattern.permute.xlu0 0
    %309 = vperm.xlu0 %308, %v301
    %v310 = vpop.permute.xlu0 %309
    %v312 = vmul.f32 %v254, %v305
    %v313 = vmul.f32 %v268, %v305
    %v314 = vmul.f32 %v282, %v305
    %v315 = vmul.f32 %v296, %v305
    %v316 = vmul.f32 %v256, %v310
    %v317 = vmul.f32 %v270, %v310
    %v318 = vmul.f32 %v284, %v310
    %v319 = vmul.f32 %v298, %v310
    %320 = vst [vmem:[#allocation5] sm:$0xff] %v312
    %321 = vst [vmem:[#allocation5 + $0x8] sm:$0xff] %v313
    %322 = vst [vmem:[#allocation5 + $0x10] sm:$0xff] %v314
    %323 = vst [vmem:[#allocation5 + $0x18] sm:$0xff] %v315
    %324 = vst [vmem:[#allocation5 + $0x20] sm:$0xff] %v316
    %325 = vst [vmem:[#allocation5 + $0x28] sm:$0xff] %v317
    %326 = vst [vmem:[#allocation5 + $0x30] sm:$0xff] %v318
    %327 = vst [vmem:[#allocation5 + $0x38] sm:$0xff] %v319
    // Predicated region
    $region22: #{tpu_custom_call.1} parent=1 // pred_check
      _
    $region23: #{tpu_custom_call.1} parent=1 // pred_check_branch
      %329 = sbr.rel (0) target = $region25
    $region24: #{tpu_custom_call.1} parent=1 // pred_region
      %331 = vsyncadd [#allocation4], 0
      %s332 = sshll.u32 [#allocation5], 4
      %s333 = int_to_ptr.vmem [resolvable:$true] %s332
      %s334 = sshll.u32 %s4, 4
      %s335 = int_to_ptr.hbm [resolvable:$true] %s334
      %340 = dma.vmem_to_hbm [thread:$0]  %s333, 1024, %s335, [#allocation4], 512, 512, 32
    $region25: #{tpu_custom_call.1} parent=1 // pred_fallthru
      _
    // Predicated region
    $region26: #{tpu_custom_call.1} parent=1 // pred_check
      _
    $region27: #{tpu_custom_call.1} parent=1 // pred_check_branch
      %342 = sbr.rel (0) target = $region29
    $region28: #{tpu_custom_call.1} parent=1 // pred_region
      %344 = dma.done [#allocation4], 1024
    $region29: #{tpu_custom_call.1} parent=1 // pred_fallthru
      _
    %345 = vsyncpa [#allocation3], 1
    %346 = vsyncpa [#allocation4], 1

</llo_original>
